<compile_context>
chip_gen: v6e
topology: v6e:2x2x1
jax: 0.10.0
libtpu: 0.0.40
codegen_flags: <defaults>
</compile_context>

<pallas_src>
import functools

import jax
import jax.numpy as jnp
from jax.experimental import pallas as pl
from jax.experimental.pallas import tpu as pltpu

LOG_STD_MAX = 2.0
LOG_STD_MIN = -5.0

HIDDEN = 256
LANE = 128


def _round_up(n, m):
    return ((n + m - 1) // m) * m


# ----------------------------------------------------------------------------
# Kernel
# ----------------------------------------------------------------------------
def actor_kernel(x_ref, w1_ref, b12_ref, w2_ref, wh_ref, bh_ref, out_ref, *,
                 action_dim):
    x = x_ref[...]                                   # (TB, obs_dim)   bf16
    b12 = b12_ref[...]                               # (2, HIDDEN)     f32

    # fc1 + ReLU  (bf16 operands, f32 accumulation on the MXU)
    h1 = jnp.dot(x, w1_ref[...], preferred_element_type=jnp.float32)
    h1 = jnp.maximum(h1 + b12[0:1, :], 0.0)

    # fc2 + ReLU
    h2 = jnp.dot(h1.astype(jnp.bfloat16), w2_ref[...],
                 preferred_element_type=jnp.float32)
    h2 = jnp.maximum(h2 + b12[1:2, :], 0.0)

    # single 128-lane fused head:
    #   cols [0:action_dim)             -> mean (raw)
    #   cols [action_dim:2*action_dim)  -> log_std (tanh + rescale)
    head = jnp.dot(h2.astype(jnp.bfloat16), wh_ref[...],
                   preferred_element_type=jnp.float32) + bh_ref[...]

    t = jnp.tanh(head)                                           # EUP slot
    ls = LOG_STD_MIN + 0.5 * (LOG_STD_MAX - LOG_STD_MIN) * (t + 1.0)
    col = jax.lax.broadcasted_iota(jnp.int32, head.shape, 1)
    out = jnp.where(col < action_dim, head, ls)

    # lane-dense, 128-aligned unmasked stores
    out_ref[...] = out.astype(out_ref.dtype)


# ----------------------------------------------------------------------------
# One-time parameter packing (hoisted out of the per-call path)
# ----------------------------------------------------------------------------
def prepare_params(params):
    """Pack/cast weights once. Returns (w1_bf, b12, w2_bf, wh_bf, bh)."""
    w1, b1, w2, b2, wm, bm, ws, bs = params
    action_dim = wm.shape[1]
    head_cols = _round_up(max(2 * action_dim, LANE), LANE)
    f32, bf16 = jnp.float32, jnp.bfloat16

    w1_bf = jnp.asarray(w1, bf16)                    # (obs_dim, 256) - no K pad
    b12 = jnp.stack([b1, b2]).astype(f32)            # (2, 256)
    w2_bf = jnp.asarray(w2, bf16)                    # (256, 256)

    wh = jnp.zeros((HIDDEN, head_cols), f32)
    wh = wh.at[:, :action_dim].set(wm)
    wh = wh.at[:, action_dim:2 * action_dim].set(ws)
    wh_bf = wh.astype(bf16)

    bh = jnp.zeros((1, head_cols), f32)
    bh = bh.at[0, :action_dim].set(bm)
    bh = bh.at[0, action_dim:2 * action_dim].set(bs)

    return (w1_bf, b12, w2_bf, wh_bf, bh)


# ----------------------------------------------------------------------------
# Per-call forward
# ----------------------------------------------------------------------------
@functools.partial(jax.jit,
                   static_argnames=("action_dim", "max_batch_tile", "out_dtype"))
def actor_forward(x, packed, *, action_dim, max_batch_tile=256,
                  out_dtype=jnp.float32):
    """x: (B, obs_dim) f32; packed: output of prepare_params().

    Returns (mean, log_std), each (B, action_dim) in out_dtype (f32 default).
    """
    w1_bf, b12, w2_bf, wh_bf, bh = packed
    B, obs_dim = x.shape
    head_cols = wh_bf.shape[1]

    # ---- batch padding + tile choice ---------------------------------------
    # Single grid step unless the batch is genuinely large: the grid is a
    # serial loop on v5e/v6e, and v7x megacore sharding only pays for tb>=128.
    Bp = _round_up(max(B, 16), 16)              # 16 rows = bf16 sublane packing
    if Bp <= max_batch_tile:
        tb = Bp
    else:
        tb = max_batch_tile
        Bp = _round_up(Bp, tb)
    grid = (Bp // tb,)

    # ---- only per-call data work: pad batch rows + cast to bf16 (fused) ----
    x_p = jnp.pad(x, ((0, Bp - B), (0, 0))).astype(jnp.bfloat16)

    # ---- specs --------------------------------------------------------------
    rep = lambda i: (0, 0)   # grid-invariant: same block -> Pallas skips refetch
    in_specs = [
        pl.BlockSpec((tb, obs_dim), lambda i: (i, 0)),           # x (unpadded K)
        pl.BlockSpec((obs_dim, HIDDEN), rep),                    # w1
        pl.BlockSpec((2, HIDDEN), rep),                          # b1 | b2
        pl.BlockSpec((HIDDEN, HIDDEN), rep),                     # w2
        pl.BlockSpec((HIDDEN, head_cols), rep),                  # wm | ws fused
        pl.BlockSpec((1, head_cols), rep),                       # bm | bs fused
    ]
    out_specs = pl.BlockSpec((tb, head_cols), lambda i: (i, 0))
    out_shape = jax.ShapeDtypeStruct((Bp, head_cols), out_dtype)

    flops = 2 * Bp * (obs_dim * HIDDEN + HIDDEN * HIDDEN + HIDDEN * head_cols)
    bytes_accessed = (x_p.size * 2 + w1_bf.size * 2 + b12.size * 4
                      + w2_bf.size * 2 + wh_bf.size * 2 + bh.size * 4
                      + Bp * head_cols * jnp.dtype(out_dtype).itemsize)
    cost = pl.CostEstimate(flops=flops,
                           transcendentals=Bp * head_cols,
                           bytes_accessed=bytes_accessed)

    out = pl.pallas_call(
        functools.partial(actor_kernel, action_dim=action_dim),
        grid_spec=pltpu.PrefetchScalarGridSpec(
            num_scalar_prefetch=0,
            grid=grid,
            in_specs=in_specs,
            out_specs=out_specs,
        ),
        out_shape=out_shape,
        compiler_params=pltpu.CompilerParams(
            dimension_semantics=("parallel",),
            vmem_limit_bytes=4 * 1024 * 1024,
        ),
        cost_estimate=cost,
    )(x_p, w1_bf, b12, w2_bf, wh_bf, bh)

    mean = out[:B, :action_dim]
    log_std = out[:B, action_dim:2 * action_dim]
    return mean, log_std


# ----------------------------------------------------------------------------
# Init + references
# ----------------------------------------------------------------------------
def init_params(key, obs_dim, action_dim):
    """PyTorch-Linear-style init: uniform(-1/sqrt(fan_in), +1/sqrt(fan_in))."""
    def linear(k, fan_in, fan_out):
        kw, kb = jax.random.split(k)
        bound = 1.0 / jnp.sqrt(fan_in)
        w = jax.random.uniform(kw, (fan_in, fan_out), jnp.float32, -bound, bound)
        b = jax.random.uniform(kb, (fan_out,), jnp.float32, -bound, bound)
        return w, b

    k1, k2, k3, k4 = jax.random.split(key, 4)
    w1, b1 = linear(k1, obs_dim, HIDDEN)
    w2, b2 = linear(k2, HIDDEN, HIDDEN)
    wm, bm = linear(k3, HIDDEN, action_dim)
    ws, bs = linear(k4, HIDDEN, action_dim)
    return (w1, b1, w2, b2, wm, bm, ws, bs)


def reference_forward_f32(x, params):
    """Pure-JAX f32 reference (matches the PyTorch module numerics)."""
    w1, b1, w2, b2, wm, bm, ws, bs = params
    h1 = jnp.maximum(x @ w1 + b1, 0.0)
    h2 = jnp.maximum(h1 @ w2 + b2, 0.0)
    mean = h2 @ wm + bm
    ls = jnp.tanh(h2 @ ws + bs)
    ls = LOG_STD_MIN + 0.5 * (LOG_STD_MAX - LOG_STD_MIN) * (ls + 1.0)
    return mean, ls


def reference_forward_bf16(x, params):
    """Pure-JAX reference with the kernel's dtype policy (bf16 operands, f32 acc)."""
    w1, b1, w2, b2, wm, bm, ws, bs = params
    bf = jnp.bfloat16
    h1 = jnp.dot(x.astype(bf), w1.astype(bf),
                 preferred_element_type=jnp.float32) + b1
    h1 = jnp.maximum(h1, 0.0)
    h2 = jnp.dot(h1.astype(bf), w2.astype(bf),
                 preferred_element_type=jnp.float32) + b2
    h2 = jnp.maximum(h2, 0.0)
    mean = jnp.dot(h2.astype(bf), wm.astype(bf),
                   preferred_element_type=jnp.float32) + bm
    ls = jnp.tanh(jnp.dot(h2.astype(bf), ws.astype(bf),
                          preferred_element_type=jnp.float32) + bs)
    ls = LOG_STD_MIN + 0.5 * (LOG_STD_MAX - LOG_STD_MIN) * (ls + 1.0)
    return mean, ls


if __name__ == "__main__":
    # MuJoCo-like small shapes (e.g. HalfCheetah: obs 17, act 6).
    # B=30 exercises batch zero-padding with a single grid step.
    B, OBS_DIM, ACTION_DIM = 30, 17, 6

    key = jax.random.PRNGKey(0)
    kx, kp = jax.random.split(key)
    x = jax.random.normal(kx, (B, OBS_DIM), jnp.float32)
    params = init_params(kp, OBS_DIM, ACTION_DIM)

    # One-time weight packing (hoisted out of the per-step call path).
    packed = jax.block_until_ready(prepare_params(params))

    # action_scale / action_bias are only consumed by get_action(), not forward().
    # TODO(synk): get_action() (Normal rsample + tanh-squash log_prob) is
    # stochastic/distributional glue and is intentionally left in plain JAX.

    mean, log_std = actor_forward(x, packed, action_dim=ACTION_DIM)
    jax.block_until_ready((mean, log_std))

    mean_bf, ls_bf = reference_forward_bf16(x, params)
    mean_f32, ls_f32 = reference_forward_f32(x, params)

    assert mean.shape == (B, ACTION_DIM) and log_std.shape == (B, ACTION_DIM)
    # tight check against the dtype-matched reference
    assert jnp.allclose(mean, mean_bf, atol=1e-2, rtol=1e-2)
    assert jnp.allclose(log_std, ls_bf, atol=1e-2, rtol=1e-2)
    # loose check against the full-f32 (PyTorch-equivalent) reference
    assert jnp.allclose(mean, mean_f32, atol=1e-1, rtol=1e-1)
    assert jnp.allclose(log_std, ls_f32, atol=1e-1, rtol=1e-1)

    print("KERNEL_OK")
</pallas_src>

<mosaic_0001>
module attributes {stable_mosaic.version = 11 : i64} {
  func.func @actor_kernel(%arg0: i32, %arg1: memref<32x17xbf16, #tpu.memory_space<vmem>>, %arg2: memref<17x256xbf16, #tpu.memory_space<vmem>>, %arg3: memref<2x256xf32, #tpu.memory_space<vmem>>, %arg4: memref<256x256xbf16, #tpu.memory_space<vmem>>, %arg5: memref<256x128xbf16, #tpu.memory_space<vmem>>, %arg6: memref<1x128xf32, #tpu.memory_space<vmem>>, %arg7: memref<32x128xf32, #tpu.memory_space<vmem>>) attributes {dimension_semantics = [#tpu.dimension_semantics<parallel>], iteration_bounds = array<i64: 1>, scalar_prefetch = 0 : i64, scratch_operands = 0 : i64, tpu.core_type = #tpu.core_type<tc>, window_params = [{transform_indices = @transform_0, window_bounds = array<i64: 32, 17>}, {pipeline_mode = #tpu.pipeline_mode<synchronous>, transform_indices = @transform_1, window_bounds = array<i64: 17, 256>}, {pipeline_mode = #tpu.pipeline_mode<synchronous>, transform_indices = @transform_2, window_bounds = array<i64: 2, 256>}, {pipeline_mode = #tpu.pipeline_mode<synchronous>, transform_indices = @transform_3, window_bounds = array<i64: 256, 256>}, {pipeline_mode = #tpu.pipeline_mode<synchronous>, transform_indices = @transform_4, window_bounds = array<i64: 256, 128>}, {pipeline_mode = #tpu.pipeline_mode<synchronous>, transform_indices = @transform_5, window_bounds = array<i64: 1, 128>}, {transform_indices = @transform_6, window_bounds = array<i64: 32, 128>}]} {
    %c0 = arith.constant 0 : index
    %c0_0 = arith.constant 0 : index
    %0 = vector.load %arg1[%c0, %c0_0] : memref<32x17xbf16, #tpu.memory_space<vmem>>, vector<32x17xbf16>
    %c0_1 = arith.constant 0 : index
    %c0_2 = arith.constant 0 : index
    %1 = vector.load %arg3[%c0_1, %c0_2] : memref<2x256xf32, #tpu.memory_space<vmem>>, vector<2x256xf32>
    %c0_3 = arith.constant 0 : index
    %c0_4 = arith.constant 0 : index
    %2 = vector.load %arg2[%c0_3, %c0_4] : memref<17x256xbf16, #tpu.memory_space<vmem>>, vector<17x256xbf16>
    %cst = arith.constant dense<0.000000e+00> : vector<32x256xf32>
    %3 = tpu.matmul %0, %2, %cst {dimension_numbers = #tpu.dot_dimension_numbers<[1], [0], [0], [1], [0, 0, 1, 1], [], []>} : vector<32x17xbf16>, vector<17x256xbf16>, vector<32x256xf32> -> vector<32x256xf32>
    %4 = vector.extract_strided_slice %1 {offsets = [0, 0], sizes = [1, 256], strides = [1, 1]} : vector<2x256xf32> to vector<1x256xf32>
    %5 = vector.broadcast %4 : vector<1x256xf32> to vector<32x256xf32>
    %6 = arith.addf %3, %5 : vector<32x256xf32>
    %cst_5 = arith.constant 0.000000e+00 : f32
    %7 = vector.broadcast %cst_5 : f32 to vector<32x256xf32>
    %8 = arith.maximumf %6, %7 : vector<32x256xf32>
    %9 = arith.truncf %8 : vector<32x256xf32> to vector<32x256xbf16>
    %c0_6 = arith.constant 0 : index
    %c0_7 = arith.constant 0 : index
    %10 = vector.load %arg4[%c0_6, %c0_7] : memref<256x256xbf16, #tpu.memory_space<vmem>>, vector<256x256xbf16>
    %cst_8 = arith.constant dense<0.000000e+00> : vector<32x256xf32>
    %11 = tpu.matmul %9, %10, %cst_8 {dimension_numbers = #tpu.dot_dimension_numbers<[1], [0], [0], [1], [0, 0, 1, 1], [], []>} : vector<32x256xbf16>, vector<256x256xbf16>, vector<32x256xf32> -> vector<32x256xf32>
    %12 = vector.extract_strided_slice %1 {offsets = [1, 0], sizes = [1, 256], strides = [1, 1]} : vector<2x256xf32> to vector<1x256xf32>
    %13 = vector.broadcast %12 : vector<1x256xf32> to vector<32x256xf32>
    %14 = arith.addf %11, %13 : vector<32x256xf32>
    %cst_9 = arith.constant 0.000000e+00 : f32
    %15 = vector.broadcast %cst_9 : f32 to vector<32x256xf32>
    %16 = arith.maximumf %14, %15 : vector<32x256xf32>
    %17 = arith.truncf %16 : vector<32x256xf32> to vector<32x256xbf16>
    %c0_10 = arith.constant 0 : index
    %c0_11 = arith.constant 0 : index
    %18 = vector.load %arg5[%c0_10, %c0_11] : memref<256x128xbf16, #tpu.memory_space<vmem>>, vector<256x128xbf16>
    %cst_12 = arith.constant dense<0.000000e+00> : vector<32x128xf32>
    %19 = tpu.matmul %17, %18, %cst_12 {dimension_numbers = #tpu.dot_dimension_numbers<[1], [0], [0], [1], [0, 0, 1, 1], [], []>} : vector<32x256xbf16>, vector<256x128xbf16>, vector<32x128xf32> -> vector<32x128xf32>
    %c0_13 = arith.constant 0 : index
    %c0_14 = arith.constant 0 : index
    %20 = vector.load %arg6[%c0_13, %c0_14] : memref<1x128xf32, #tpu.memory_space<vmem>>, vector<1x128xf32>
    %21 = vector.broadcast %20 : vector<1x128xf32> to vector<32x128xf32>
    %22 = arith.addf %19, %21 : vector<32x128xf32>
    %23 = math.tanh %22 : vector<32x128xf32>
    %cst_15 = arith.constant 1.000000e+00 : f32
    %24 = vector.broadcast %cst_15 : f32 to vector<32x128xf32>
    %25 = arith.addf %23, %24 : vector<32x128xf32>
    %cst_16 = arith.constant 3.500000e+00 : f32
    %26 = vector.broadcast %cst_16 : f32 to vector<32x128xf32>
    %27 = arith.mulf %26, %25 : vector<32x128xf32>
    %cst_17 = arith.constant -5.000000e+00 : f32
    %28 = vector.broadcast %cst_17 : f32 to vector<32x128xf32>
    %29 = arith.addf %28, %27 : vector<32x128xf32>
    %30 = tpu.iota {dimensions = array<i32: 1>} : vector<32x128xi32>
    %c6_i32 = arith.constant 6 : i32
    %31 = vector.broadcast %c6_i32 : i32 to vector<32x128xi32>
    %32 = arith.cmpi slt, %30, %31 : vector<32x128xi32>
    %33 = arith.select %32, %22, %29 : vector<32x128xi1>, vector<32x128xf32>
    %c0_18 = arith.constant 0 : index
    %c0_19 = arith.constant 0 : index
    %34 = vector.load %arg7[%c0_18, %c0_19] : memref<32x128xf32, #tpu.memory_space<vmem>>, vector<32x128xf32>
    tpu.vector_store %arg7[%c0_18, %c0_19], %33 {strides = array<i32>} : memref<32x128xf32, #tpu.memory_space<vmem>>, vector<32x128xf32>,
    return
  }
  func.func @transform_0(%arg0: i32) -> (i32, i32) {
    %c0_i32 = arith.constant 0 : i32
    %c0_i32_0 = arith.constant 0 : i32
    return %arg0, %c0_i32 : i32, i32
  }
  func.func @transform_1(%arg0: i32) -> (i32, i32) {
    %c0_i32 = arith.constant 0 : i32
    %c0_i32_0 = arith.constant 0 : i32
    %c0_i32_1 = arith.constant 0 : i32
    return %c0_i32, %c0_i32_0 : i32, i32
  }
  func.func @transform_2(%arg0: i32) -> (i32, i32) {
    %c0_i32 = arith.constant 0 : i32
    %c0_i32_0 = arith.constant 0 : i32
    %c0_i32_1 = arith.constant 0 : i32
    return %c0_i32, %c0_i32_0 : i32, i32
  }
  func.func @transform_3(%arg0: i32) -> (i32, i32) {
    %c0_i32 = arith.constant 0 : i32
    %c0_i32_0 = arith.constant 0 : i32
    %c0_i32_1 = arith.constant 0 : i32
    return %c0_i32, %c0_i32_0 : i32, i32
  }
  func.func @transform_4(%arg0: i32) -> (i32, i32) {
    %c0_i32 = arith.constant 0 : i32
    %c0_i32_0 = arith.constant 0 : i32
    %c0_i32_1 = arith.constant 0 : i32
    return %c0_i32, %c0_i32_0 : i32, i32
  }
  func.func @transform_5(%arg0: i32) -> (i32, i32) {
    %c0_i32 = arith.constant 0 : i32
    %c0_i32_0 = arith.constant 0 : i32
    %c0_i32_1 = arith.constant 0 : i32
    return %c0_i32, %c0_i32_0 : i32, i32
  }
  func.func @transform_6(%arg0: i32) -> (i32, i32) {
    %c0_i32 = arith.constant 0 : i32
    %c0_i32_0 = arith.constant 0 : i32
    return %arg0, %c0_i32 : i32, i32
  }
}

</mosaic_0001>

<llo_original>
// kernel: actor_forward.1
$region0: #{actor_forward.1}
  #allocation0 [shape = 'u32[]', space=smem, size = 0x4, offset = 0x4, fixed_abs, tag = 'smem constant byte address 0x4 - core index']
  #allocation1 [shape = 'u32[144,128]{1,0:T(1,128)}', space=vmem, size = 0x12000, scoped, tag = 'internal scratch']
  %s0 = inlined_call_operand.vmem [shape: bf16[32,17], index: 0, kind: input, shape index: {}]
  %s1 = inlined_call_operand.vmem [shape: bf16[17,256], index: 1, kind: input, shape index: {}]
  %s2 = inlined_call_operand.vmem [shape: f32[2,256], index: 2, kind: input, shape index: {}]
  %s3 = inlined_call_operand.hbm [shape: bf16[256,256], index: 3, kind: input, shape index: {}]
  %s4 = inlined_call_operand.hbm [shape: bf16[256,128], index: 4, kind: input, shape index: {}]
  %s5 = inlined_call_operand.vmem [shape: f32[1,128], index: 5, kind: input, shape index: {}]
  %s6 = inlined_call_operand.vmem [shape: f32[32,128], index: 6, kind: output, shape index: {}]
  %s7 = sld [smem:[#allocation0]]
  $region42: #{actor_forward.1} parent=0
    _
  %s9 = ssub.s32 1, %s7
  %s10 = scalar_select 0, %s9, %s7
  $region1: #{actor_forward.1} parent=0
    #allocation2 [shape = 'u8[131072]{0}', space=vmem, size = 0x20000, scoped, tag = 'input window, operand 3, single buffered']
    #allocation3 [shape = 's32[1]{0}', space=sflag, size = 0x4, scoped, tag = 'scoped memory for actor_forward.1']
    #allocation4 [shape = 'u8[65536]{0}', space=vmem, size = 0x10000, scoped, tag = 'input window, operand 4, single buffered']
    #allocation5 [shape = 's32[1]{0}', space=sflag, size = 0x4, scoped, tag = 'scoped memory for actor_forward.1']
    %11 = vsyncpa [#allocation3], 0
    %12 = vsyncpa [#allocation5], 0
    // Predicated region
    $region2: #{actor_forward.1} parent=1 // pred_check
      _
    $region3: #{actor_forward.1} parent=1 // pred_check_branch
      %14 = sbr.rel (0) target = $region5
    $region4: #{actor_forward.1} parent=1 // pred_region
      _
    $region5: #{actor_forward.1} parent=1 // pred_fallthru
      _
    // Predicated region
    $region6: #{actor_forward.1} parent=1 // pred_check
      _
    $region7: #{actor_forward.1} parent=1 // pred_check_branch
      %16 = sbr.rel (0) target = $region9
    $region8: #{actor_forward.1} parent=1 // pred_region
      _
    $region9: #{actor_forward.1} parent=1 // pred_fallthru
      _
    // Predicated region
    $region10: #{actor_forward.1} parent=1 // pred_check
      _
    $region11: #{actor_forward.1} parent=1 // pred_check_branch
      %18 = sbr.rel (0) target = $region13
    $region12: #{actor_forward.1} parent=1 // pred_region
      _
    $region13: #{actor_forward.1} parent=1 // pred_fallthru
      _
    // Predicated region
    $region14: #{actor_forward.1} parent=1 // pred_check
      _
    $region15: #{actor_forward.1} parent=1 // pred_check_branch
      %20 = sbr.rel (0) target = $region17
    $region16: #{actor_forward.1} parent=1 // pred_region
      %s22 = ssub.s32 4096, 4096
      %23 = vsyncadd [#allocation3], %s22
      %s24 = sshll.u32 [#allocation2], 4
      %s25 = int_to_ptr.vmem [resolvable:$true] %s24
      %30 = dma.hbm_to_vmem [thread:$0]  %s3, 4096, %s25, [#allocation3], 128, 128, 8
    $region17: #{actor_forward.1} parent=1 // pred_fallthru
      _
    // Predicated region
    $region18: #{actor_forward.1} parent=1 // pred_check
      _
    $region19: #{actor_forward.1} parent=1 // pred_check_branch
      %32 = sbr.rel (0) target = $region21
    $region20: #{actor_forward.1} parent=1 // pred_region
      %s34 = ssub.s32 2048, 2048
      %35 = vsyncadd [#allocation5], %s34
      %s36 = sshll.u32 [#allocation4], 4
      %s37 = int_to_ptr.vmem [resolvable:$true] %s36
      %42 = dma.hbm_to_vmem [thread:$0]  %s4, 2048, %s37, [#allocation5], 64, 64, 4
    $region21: #{actor_forward.1} parent=1 // pred_fallthru
      _
    // Predicated region
    $region22: #{actor_forward.1} parent=1 // pred_check
      _
    $region23: #{actor_forward.1} parent=1 // pred_check_branch
      %44 = sbr.rel (0) target = $region25
    $region24: #{actor_forward.1} parent=1 // pred_region
      _
    $region25: #{actor_forward.1} parent=1 // pred_fallthru
      _
    // Predicated region
    $region26: #{actor_forward.1} parent=1 // pred_check
      _
    $region27: #{actor_forward.1} parent=1 // pred_check_branch
      %46 = sbr.rel (0) target = $region29
    $region28: #{actor_forward.1} parent=1 // pred_region
      %47 = dma.done [#allocation3], 4096
    $region29: #{actor_forward.1} parent=1 // pred_fallthru
      _
    // Predicated region
    $region30: #{actor_forward.1} parent=1 // pred_check
      _
    $region31: #{actor_forward.1} parent=1 // pred_check_branch
      %49 = sbr.rel (0) target = $region33
    $region32: #{actor_forward.1} parent=1 // pred_region
      %50 = dma.done [#allocation5], 2048
    $region33: #{actor_forward.1} parent=1 // pred_fallthru
      _
    %v52 = vld [vmem:[%s0] sm:$0xf]
    %v53 = vld [vmem:[%s0 + $0x4] sm:$0xf]
    %v54 = vld [vmem:[%s0 + $0x8] sm:$0xf]
    %v55 = vld [vmem:[%s0 + $0xc] sm:$0xf]
    %v56 = vld [vmem:[%s2] sm:$0xf]
    %v57 = vld [vmem:[%s1] sm:$0xff]
    %v58 = vld [vmem:[%s1 + $0x8] sm:$0xff]
    %v59 = vld [vmem:[%s1 + $0x10] sm:$0x11]
    %v61 = vlaneseq
    %v62 = vshrl.u32 %v61, 7
    %v63 = vsub.s32 0, %v62
    %v64 = vrot.slane %v56, %v63
    %v65 = vlaneseq
    %v66 = vshrl.u32 %v65, 7
    %v67 = vsub.s32 2, %v66
    %v68 = vrot.slane %v56, %v67
    %v71 = vlaneseq
    %v72 = vshrl.u32 %v71, 7
    %v73 = vsub.s32 0, %v72
    %v74 = vrot.slane %v64, %v73
    %v75 = vlaneseq
    %v76 = vshrl.u32 %v75, 7
    %v77 = vsub.s32 0, %v76
    %v78 = vrot.slane %v68, %v77
    %v83 = vunpack.c.l.b16 %v52
    %v84 = vunpack.c.l.b16 %v53
    %v85 = vunpack.c.l.b16 %v54
    %v86 = vunpack.c.l.b16 %v55
    %v87 = vpack.c.b16 %v84, %v83
    %v88 = vpack.c.b16 %v86, %v85
    %v92 = vunpack.c.l.b16 %v57
    %v93 = vunpack.c.h.b16 %v57
    %v94 = vunpack.c.l.b16 %v58
    %v95 = vunpack.c.h.b16 %v58
    %v96 = vunpack.c.l.b16 %v59
    %v97 = vunpack.c.h.b16 %v59
    %v98 = vpack.c.b16 %v94, %v92
    %v99 = vpack.c.b16 %v95, %v93
    %v100 = vpack.c.b16 %v96, %v96
    %v101 = vpack.c.b16 %v97, %v97
    %vm104 = vcmask 138240
    %v106 = vsel %vm104, %v87, 0
    %v109 = vsel %vm104, %v88, 0
    %vm111 = vcmask 1040384
    %v112 = vsel 0, 4294967295, 65535
    %v113 = vsel %vm111, %v112, 0
    %v115 = vand.u32 %v100, %v113
    %v118 = vand.u32 %v101, %v113
    %120 = vmatprep.subr.bf16.mxu0 0
    %121 = vmatpush1.bf16.msra.mxu0 0
    %122 = vmatprep.subr.bf16.mxu0 0
    %123 = vmatpush1.bf16.msra.mxu0 0
    %124 = vmatprep.subr.bf16.mxu0 0
    %125 = vmatpush1.bf16.msra.mxu0 0
    %126 = vmatprep.subr.bf16.mxu0 0
    %127 = vmatpush1.bf16.msra.mxu0 0
    %128 = vmatprep.subr.bf16.mxu0 0
    %129 = vmatpush1.bf16.msra.mxu0 0
    %130 = vmatprep.subr.bf16.mxu0 0
    %131 = vmatpush1.bf16.msra.mxu0 0
    %132 = vmatprep.subr.bf16.mxu0 %v118
    %133 = vmatpush1.bf16.msra.mxu0 %v115
    %134 = vmatprep.subr.bf16.mxu0 %v99
    %135 = vmatpush1.bf16.msra.mxu0 %v98
    %136 = vmatprep.subr.bf16.mxu0 0
    %137 = vmatpush2.bf16.msra.mxu0 0
    %138 = vmatprep.subr.bf16.mxu0 0
    %139 = vmatpush2.bf16.msra.mxu0 0
    %140 = vmatprep.subr.bf16.mxu0 0
    %141 = vmatpush2.bf16.msra.mxu0 0
    %142 = vmatprep.subr.bf16.mxu0 0
    %143 = vmatpush2.bf16.msra.mxu0 0
    %144 = vmatprep.subr.bf16.mxu0 0
    %145 = vmatpush2.bf16.msra.mxu0 0
    %146 = vmatprep.subr.bf16.mxu0 0
    %147 = vmatpush2.bf16.msra.mxu0 0
    %148 = vmatprep.subr.bf16.mxu0 0
    %149 = vmatpush2.bf16.msra.mxu0 0
    %150 = vmatprep.subr.bf16.mxu0 0
    %151 = vmatpush2.bf16.msra.mxu0 0
    %152 = vmatprep.mubr.bf16.mxu0 0
    %153 = vmatmul.mubr.bf16.gmra.mxu0 %v106
    %v154 = vpop.f32.mrf.mxu0
    %v155 = vadd.f32 %v74, %v154
    %v156 = vpop.f32.mrf.mxu0
    %v157 = vadd.f32 %v78, %v156
    %v158 = vpop.f32.mrf.mxu0
    %v159 = vadd.f32 %v74, %v158
    %v160 = vpop.f32.mrf.mxu0
    %v161 = vadd.f32 %v78, %v160
    %162 = vmatprep.mubr.bf16.mxu0 0
    %163 = vmatmul.mubr.bf16.gmra.mxu0 %v109
    %v164 = vpop.f32.mrf.mxu0
    %v165 = vadd.f32 %v74, %v164
    %v166 = vpop.f32.mrf.mxu0
    %v167 = vadd.f32 %v78, %v166
    %v168 = vpop.f32.mrf.mxu0
    %v169 = vadd.f32 %v74, %v168
    %v170 = vpop.f32.mrf.mxu0
    %v171 = vadd.f32 %v78, %v170
    %172 = vdwg.mxu0
    %v173 = vmax.f32 %v155, 0.0
    %v174 = vmax.f32 %v157, 0.0
    %v175 = vmax.f32 %v159, 0.0
    %v176 = vmax.f32 %v161, 0.0
    %v177 = vmax.f32 %v165, 0.0
    %v178 = vmax.f32 %v167, 0.0
    %v179 = vmax.f32 %v169, 0.0
    %v180 = vmax.f32 %v171, 0.0
    %v181 = vpack.c.bf16 %v175, %v173
    %v182 = vpack.c.bf16 %v176, %v174
    %v183 = vpack.c.bf16 %v179, %v177
    %v184 = vpack.c.bf16 %v180, %v178
    %v185 = vld [vmem:[#allocation2] sm:$0xff]
    %v186 = vld [vmem:[#allocation2 + $0x8] sm:$0xff]
    %v187 = vld [vmem:[#allocation2 + $0x10] sm:$0xff]
    %v188 = vld [vmem:[#allocation2 + $0x18] sm:$0xff]
    %v189 = vld [vmem:[#allocation2 + $0x20] sm:$0xff]
    %v190 = vld [vmem:[#allocation2 + $0x28] sm:$0xff]
    %v191 = vld [vmem:[#allocation2 + $0x30] sm:$0xff]
    %v192 = vld [vmem:[#allocation2 + $0x38] sm:$0xff]
    %v193 = vld [vmem:[#allocation2 + $0x40] sm:$0xff]
    %v194 = vld [vmem:[#allocation2 + $0x48] sm:$0xff]
    %v195 = vld [vmem:[#allocation2 + $0x50] sm:$0xff]
    %v196 = vld [vmem:[#allocation2 + $0x58] sm:$0xff]
    %v197 = vld [vmem:[#allocation2 + $0x60] sm:$0xff]
    %v198 = vld [vmem:[#allocation2 + $0x68] sm:$0xff]
    %v199 = vld [vmem:[#allocation2 + $0x70] sm:$0xff]
    %v200 = vld [vmem:[#allocation2 + $0x78] sm:$0xff]
    %v201 = vld [vmem:[#allocation2 + $0x80] sm:$0xff]
    %v202 = vld [vmem:[#allocation2 + $0x88] sm:$0xff]
    %v203 = vld [vmem:[#allocation2 + $0x90] sm:$0xff]
    %v204 = vld [vmem:[#allocation2 + $0x98] sm:$0xff]
    %v205 = vld [vmem:[#allocation2 + $0xa0] sm:$0xff]
    %v206 = vld [vmem:[#allocation2 + $0xa8] sm:$0xff]
    %v207 = vld [vmem:[#allocation2 + $0xb0] sm:$0xff]
    %v208 = vld [vmem:[#allocation2 + $0xb8] sm:$0xff]
    %v209 = vld [vmem:[#allocation2 + $0xc0] sm:$0xff]
    %v210 = vld [vmem:[#allocation2 + $0xc8] sm:$0xff]
    %v211 = vld [vmem:[#allocation2 + $0xd0] sm:$0xff]
    %v212 = vld [vmem:[#allocation2 + $0xd8] sm:$0xff]
    %v213 = vld [vmem:[#allocation2 + $0xe0] sm:$0xff]
    %v214 = vld [vmem:[#allocation2 + $0xe8] sm:$0xff]
    %v215 = vld [vmem:[#allocation2 + $0xf0] sm:$0xff]
    %v216 = vld [vmem:[#allocation2 + $0xf8] sm:$0xff]
    %v217 = vlaneseq
    %v218 = vshrl.u32 %v217, 7
    %v219 = vsub.s32 1, %v218
    %v220 = vrot.slane %v56, %v219
    %v221 = vlaneseq
    %v222 = vshrl.u32 %v221, 7
    %v223 = vsub.s32 3, %v222
    %v224 = vrot.slane %v56, %v223
    %v227 = vlaneseq
    %v228 = vshrl.u32 %v227, 7
    %v229 = vsub.s32 1, %v228
    %v230 = vrot.slane %v220, %v229
    %v231 = vlaneseq
    %v232 = vshrl.u32 %v231, 7
    %v233 = vsub.s32 1, %v232
    %v234 = vrot.slane %v224, %v233
    %v267 = vunpack.c.l.b16 %v185
    %v268 = vunpack.c.h.b16 %v185
    %v269 = vunpack.c.l.b16 %v186
    %v270 = vunpack.c.h.b16 %v186
    %v271 = vunpack.c.l.b16 %v187
    %v272 = vunpack.c.h.b16 %v187
    %v273 = vunpack.c.l.b16 %v188
    %v274 = vunpack.c.h.b16 %v188
    %v275 = vunpack.c.l.b16 %v189
    %v276 = vunpack.c.h.b16 %v189
    %v277 = vunpack.c.l.b16 %v190
    %v278 = vunpack.c.h.b16 %v190
    %v279 = vunpack.c.l.b16 %v191
    %v280 = vunpack.c.h.b16 %v191
    %v281 = vunpack.c.l.b16 %v192
    %v282 = vunpack.c.h.b16 %v192
    %v283 = vunpack.c.l.b16 %v193
    %v284 = vunpack.c.h.b16 %v193
    %v285 = vunpack.c.l.b16 %v194
    %v286 = vunpack.c.h.b16 %v194
    %v287 = vunpack.c.l.b16 %v195
    %v288 = vunpack.c.h.b16 %v195
    %v289 = vunpack.c.l.b16 %v196
    %v290 = vunpack.c.h.b16 %v196
    %v291 = vunpack.c.l.b16 %v197
    %v292 = vunpack.c.h.b16 %v197
    %v293 = vunpack.c.l.b16 %v198
    %v294 = vunpack.c.h.b16 %v198
    %v295 = vunpack.c.l.b16 %v199
    %v296 = vunpack.c.h.b16 %v199
    %v297 = vunpack.c.l.b16 %v200
    %v298 = vunpack.c.h.b16 %v200
    %v299 = vunpack.c.l.b16 %v201
    %v300 = vunpack.c.h.b16 %v201
    %v301 = vunpack.c.l.b16 %v202
    %v302 = vunpack.c.h.b16 %v202
    %v303 = vunpack.c.l.b16 %v203
    %v304 = vunpack.c.h.b16 %v203
    %v305 = vunpack.c.l.b16 %v204
    %v306 = vunpack.c.h.b16 %v204
    %v307 = vunpack.c.l.b16 %v205
    %v308 = vunpack.c.h.b16 %v205
    %v309 = vunpack.c.l.b16 %v206
    %v310 = vunpack.c.h.b16 %v206
    %v311 = vunpack.c.l.b16 %v207
    %v312 = vunpack.c.h.b16 %v207
    %v313 = vunpack.c.l.b16 %v208
    %v314 = vunpack.c.h.b16 %v208
    %v315 = vunpack.c.l.b16 %v209
    %v316 = vunpack.c.h.b16 %v209
    %v317 = vunpack.c.l.b16 %v210
    %v318 = vunpack.c.h.b16 %v210
    %v319 = vunpack.c.l.b16 %v211
    %v320 = vunpack.c.h.b16 %v211
    %v321 = vunpack.c.l.b16 %v212
    %v322 = vunpack.c.h.b16 %v212
    %v323 = vunpack.c.l.b16 %v213
    %v324 = vunpack.c.h.b16 %v213
    %v325 = vunpack.c.l.b16 %v214
    %v326 = vunpack.c.h.b16 %v214
    %v327 = vunpack.c.l.b16 %v215
    %v328 = vunpack.c.h.b16 %v215
    %v329 = vunpack.c.l.b16 %v216
    %v330 = vunpack.c.h.b16 %v216
    %v331 = vpack.c.b16 %v269, %v267
    %v332 = vpack.c.b16 %v270, %v268
    %v333 = vpack.c.b16 %v273, %v271
    %v334 = vpack.c.b16 %v274, %v272
    %v335 = vpack.c.b16 %v277, %v275
    %v336 = vpack.c.b16 %v278, %v276
    %v337 = vpack.c.b16 %v281, %v279
    %v338 = vpack.c.b16 %v282, %v280
    %v339 = vpack.c.b16 %v285, %v283
    %v340 = vpack.c.b16 %v286, %v284
    %v341 = vpack.c.b16 %v289, %v287
    %v342 = vpack.c.b16 %v290, %v288
    %v343 = vpack.c.b16 %v293, %v291
    %v344 = vpack.c.b16 %v294, %v292
    %v345 = vpack.c.b16 %v297, %v295
    %v346 = vpack.c.b16 %v298, %v296
    %v347 = vpack.c.b16 %v301, %v299
    %v348 = vpack.c.b16 %v302, %v300
    %v349 = vpack.c.b16 %v305, %v303
    %v350 = vpack.c.b16 %v306, %v304
    %v351 = vpack.c.b16 %v309, %v307
    %v352 = vpack.c.b16 %v310, %v308
    %v353 = vpack.c.b16 %v313, %v311
    %v354 = vpack.c.b16 %v314, %v312
    %v355 = vpack.c.b16 %v317, %v315
    %v356 = vpack.c.b16 %v318, %v316
    %v357 = vpack.c.b16 %v321, %v319
    %v358 = vpack.c.b16 %v322, %v320
    %v359 = vpack.c.b16 %v325, %v323
    %v360 = vpack.c.b16 %v326, %v324
    %v361 = vpack.c.b16 %v329, %v327
    %v362 = vpack.c.b16 %v330, %v328
    %395 = vmatprep.subr.bf16.mxu0 %v346
    %396 = vmatpush1.bf16.msra.mxu0 %v345
    %397 = vmatprep.subr.bf16.mxu0 %v344
    %398 = vmatpush1.bf16.msra.mxu0 %v343
    %399 = vmatprep.subr.bf16.mxu0 %v342
    %400 = vmatpush1.bf16.msra.mxu0 %v341
    %401 = vmatprep.subr.bf16.mxu0 %v340
    %402 = vmatpush1.bf16.msra.mxu0 %v339
    %403 = vmatprep.subr.bf16.mxu0 %v338
    %404 = vmatpush1.bf16.msra.mxu0 %v337
    %405 = vmatprep.subr.bf16.mxu0 %v336
    %406 = vmatpush1.bf16.msra.mxu0 %v335
    %407 = vmatprep.subr.bf16.mxu0 %v334
    %408 = vmatpush1.bf16.msra.mxu0 %v333
    %409 = vmatprep.subr.bf16.mxu0 %v332
    %410 = vmatpush1.bf16.msra.mxu0 %v331
    %411 = vmatprep.subr.bf16.mxu0 %v362
    %412 = vmatpush2.bf16.msra.mxu0 %v361
    %413 = vmatprep.subr.bf16.mxu0 %v360
    %414 = vmatpush2.bf16.msra.mxu0 %v359
    %415 = vmatprep.subr.bf16.mxu0 %v358
    %416 = vmatpush2.bf16.msra.mxu0 %v357
    %417 = vmatprep.subr.bf16.mxu0 %v356
    %418 = vmatpush2.bf16.msra.mxu0 %v355
    %419 = vmatprep.subr.bf16.mxu0 %v354
    %420 = vmatpush2.bf16.msra.mxu0 %v353
    %421 = vmatprep.subr.bf16.mxu0 %v352
    %422 = vmatpush2.bf16.msra.mxu0 %v351
    %423 = vmatprep.subr.bf16.mxu0 %v350
    %424 = vmatpush2.bf16.msra.mxu0 %v349
    %425 = vmatprep.subr.bf16.mxu0 %v348
    %426 = vmatpush2.bf16.msra.mxu0 %v347
    %427 = vmatprep.mubr.bf16.mxu0 %v182
    %428 = vmatmul.mubr.bf16.gmra.mxu0 %v181
    %v429 = vpop.f32.mrf.mxu0
    %v430 = vadd.f32 %v230, %v429
    %v431 = vpop.f32.mrf.mxu0
    %v432 = vadd.f32 %v234, %v431
    %v433 = vpop.f32.mrf.mxu0
    %v434 = vadd.f32 %v230, %v433
    %v435 = vpop.f32.mrf.mxu0
    %v436 = vadd.f32 %v234, %v435
    %437 = vmatprep.mubr.bf16.mxu0 %v184
    %438 = vmatmul.mubr.bf16.gmra.mxu0 %v183
    %v439 = vpop.f32.mrf.mxu0
    %v440 = vadd.f32 %v230, %v439
    %v441 = vpop.f32.mrf.mxu0
    %v442 = vadd.f32 %v234, %v441
    %v443 = vpop.f32.mrf.mxu0
    %v444 = vadd.f32 %v230, %v443
    %v445 = vpop.f32.mrf.mxu0
    %v446 = vadd.f32 %v234, %v445
    %447 = vdwg.mxu0
    %v448 = vmax.f32 %v430, 0.0
    %v449 = vmax.f32 %v432, 0.0
    %v450 = vmax.f32 %v434, 0.0
    %v451 = vmax.f32 %v436, 0.0
    %v452 = vmax.f32 %v440, 0.0
    %v453 = vmax.f32 %v442, 0.0
    %v454 = vmax.f32 %v444, 0.0
    %v455 = vmax.f32 %v446, 0.0
    %v456 = vpack.c.bf16 %v450, %v448
    %v457 = vpack.c.bf16 %v451, %v449
    %v458 = vpack.c.bf16 %v454, %v452
    %v459 = vpack.c.bf16 %v455, %v453
    %v460 = vld [vmem:[#allocation4] sm:$0xf]
    %v461 = vld [vmem:[#allocation4 + $0x4] sm:$0xf]
    %v462 = vld [vmem:[#allocation4 + $0x8] sm:$0xf]
    %v463 = vld [vmem:[#allocation4 + $0xc] sm:$0xf]
    %v464 = vld [vmem:[#allocation4 + $0x10] sm:$0xf]
    %v465 = vld [vmem:[#allocation4 + $0x14] sm:$0xf]
    %v466 = vld [vmem:[#allocation4 + $0x18] sm:$0xf]
    %v467 = vld [vmem:[#allocation4 + $0x1c] sm:$0xf]
    %v468 = vld [vmem:[#allocation4 + $0x20] sm:$0xf]
    %v469 = vld [vmem:[#allocation4 + $0x24] sm:$0xf]
    %v470 = vld [vmem:[#allocation4 + $0x28] sm:$0xf]
    %v471 = vld [vmem:[#allocation4 + $0x2c] sm:$0xf]
    %v472 = vld [vmem:[#allocation4 + $0x30] sm:$0xf]
    %v473 = vld [vmem:[#allocation4 + $0x34] sm:$0xf]
    %v474 = vld [vmem:[#allocation4 + $0x38] sm:$0xf]
    %v475 = vld [vmem:[#allocation4 + $0x3c] sm:$0xf]
    %v476 = vld [vmem:[#allocation4 + $0x40] sm:$0xf]
    %v477 = vld [vmem:[#allocation4 + $0x44] sm:$0xf]
    %v478 = vld [vmem:[#allocation4 + $0x48] sm:$0xf]
    %v479 = vld [vmem:[#allocation4 + $0x4c] sm:$0xf]
    %v480 = vld [vmem:[#allocation4 + $0x50] sm:$0xf]
    %v481 = vld [vmem:[#allocation4 + $0x54] sm:$0xf]
    %v482 = vld [vmem:[#allocation4 + $0x58] sm:$0xf]
    %v483 = vld [vmem:[#allocation4 + $0x5c] sm:$0xf]
    %v484 = vld [vmem:[#allocation4 + $0x60] sm:$0xf]
    %v485 = vld [vmem:[#allocation4 + $0x64] sm:$0xf]
    %v486 = vld [vmem:[#allocation4 + $0x68] sm:$0xf]
    %v487 = vld [vmem:[#allocation4 + $0x6c] sm:$0xf]
    %v488 = vld [vmem:[#allocation4 + $0x70] sm:$0xf]
    %v489 = vld [vmem:[#allocation4 + $0x74] sm:$0xf]
    %v490 = vld [vmem:[#allocation4 + $0x78] sm:$0xf]
    %v491 = vld [vmem:[#allocation4 + $0x7c] sm:$0xf]
    %v492 = vld [vmem:[%s5] sm:$0x1]
    %v494 = vlaneseq
    %v495 = vshrl.u32 %v494, 7
    %v496 = vsub.s32 0, %v495
    %v497 = vrot.slane %v492, %v496
    %v531 = vunpack.c.l.b16 %v460
    %v532 = vunpack.c.l.b16 %v461
    %v533 = vunpack.c.l.b16 %v462
    %v534 = vunpack.c.l.b16 %v463
    %v535 = vunpack.c.l.b16 %v464
    %v536 = vunpack.c.l.b16 %v465
    %v537 = vunpack.c.l.b16 %v466
    %v538 = vunpack.c.l.b16 %v467
    %v539 = vunpack.c.l.b16 %v468
    %v540 = vunpack.c.l.b16 %v469
    %v541 = vunpack.c.l.b16 %v470
    %v542 = vunpack.c.l.b16 %v471
    %v543 = vunpack.c.l.b16 %v472
    %v544 = vunpack.c.l.b16 %v473
    %v545 = vunpack.c.l.b16 %v474
    %v546 = vunpack.c.l.b16 %v475
    %v547 = vunpack.c.l.b16 %v476
    %v548 = vunpack.c.l.b16 %v477
    %v549 = vunpack.c.l.b16 %v478
    %v550 = vunpack.c.l.b16 %v479
    %v551 = vunpack.c.l.b16 %v480
    %v552 = vunpack.c.l.b16 %v481
    %v553 = vunpack.c.l.b16 %v482
    %v554 = vunpack.c.l.b16 %v483
    %v555 = vunpack.c.l.b16 %v484
    %v556 = vunpack.c.l.b16 %v485
    %v557 = vunpack.c.l.b16 %v486
    %v558 = vunpack.c.l.b16 %v487
    %v559 = vunpack.c.l.b16 %v488
    %v560 = vunpack.c.l.b16 %v489
    %v561 = vunpack.c.l.b16 %v490
    %v562 = vunpack.c.l.b16 %v491
    %v563 = vpack.c.b16 %v532, %v531
    %v564 = vpack.c.b16 %v534, %v533
    %v565 = vpack.c.b16 %v536, %v535
    %v566 = vpack.c.b16 %v538, %v537
    %v567 = vpack.c.b16 %v540, %v539
    %v568 = vpack.c.b16 %v542, %v541
    %v569 = vpack.c.b16 %v544, %v543
    %v570 = vpack.c.b16 %v546, %v545
    %v571 = vpack.c.b16 %v548, %v547
    %v572 = vpack.c.b16 %v550, %v549
    %v573 = vpack.c.b16 %v552, %v551
    %v574 = vpack.c.b16 %v554, %v553
    %v575 = vpack.c.b16 %v556, %v555
    %v576 = vpack.c.b16 %v558, %v557
    %v577 = vpack.c.b16 %v560, %v559
    %v578 = vpack.c.b16 %v562, %v561
    %595 = vmatprep.subr.bf16.mxu0 0
    %596 = vmatpush1.bf16.msra.mxu0 %v570
    %597 = vmatprep.subr.bf16.mxu0 0
    %598 = vmatpush1.bf16.msra.mxu0 %v569
    %599 = vmatprep.subr.bf16.mxu0 0
    %600 = vmatpush1.bf16.msra.mxu0 %v568
    %601 = vmatprep.subr.bf16.mxu0 0
    %602 = vmatpush1.bf16.msra.mxu0 %v567
    %603 = vmatprep.subr.bf16.mxu0 0
    %604 = vmatpush1.bf16.msra.mxu0 %v566
    %605 = vmatprep.subr.bf16.mxu0 0
    %606 = vmatpush1.bf16.msra.mxu0 %v565
    %607 = vmatprep.subr.bf16.mxu0 0
    %608 = vmatpush1.bf16.msra.mxu0 %v564
    %609 = vmatprep.subr.bf16.mxu0 0
    %610 = vmatpush1.bf16.msra.mxu0 %v563
    %611 = vmatprep.subr.bf16.mxu0 0
    %612 = vmatpush2.bf16.msra.mxu0 %v578
    %613 = vmatprep.subr.bf16.mxu0 0
    %614 = vmatpush2.bf16.msra.mxu0 %v577
    %615 = vmatprep.subr.bf16.mxu0 0
    %616 = vmatpush2.bf16.msra.mxu0 %v576
    %617 = vmatprep.subr.bf16.mxu0 0
    %618 = vmatpush2.bf16.msra.mxu0 %v575
    %619 = vmatprep.subr.bf16.mxu0 0
    %620 = vmatpush2.bf16.msra.mxu0 %v574
    %621 = vmatprep.subr.bf16.mxu0 0
    %622 = vmatpush2.bf16.msra.mxu0 %v573
    %623 = vmatprep.subr.bf16.mxu0 0
    %624 = vmatpush2.bf16.msra.mxu0 %v572
    %625 = vmatprep.subr.bf16.mxu0 0
    %626 = vmatpush2.bf16.msra.mxu0 %v571
    %627 = vmatprep.mubr.bf16.mxu0 %v457
    %628 = vmatmul.mubr.bf16.gmra.mxu0 %v456
    %v629 = vpop.f32.mrf.mxu0
    %v630 = vadd.f32 %v497, %v629
    %v631 = vpop.f32.mrf.mxu0
    %v632 = vpop.f32.mrf.mxu0
    %v633 = vadd.f32 %v497, %v632
    %v634 = vpop.f32.mrf.mxu0
    %635 = vmatprep.mubr.bf16.mxu0 %v459
    %636 = vmatmul.mubr.bf16.gmra.mxu0 %v458
    %v637 = vpop.f32.mrf.mxu0
    %v638 = vadd.f32 %v497, %v637
    %v639 = vpop.f32.mrf.mxu0
    %v640 = vpop.f32.mrf.mxu0
    %v641 = vadd.f32 %v497, %v640
    %v642 = vpop.f32.mrf.mxu0
    %643 = vdwg.mxu0
    %v644 = vtanh.pop %v630
    %v645 = vtanh.pop %v633
    %v646 = vtanh.pop %v638
    %v647 = vtanh.pop %v641
    %v648 = vadd.f32 %v644, 1.0
    %v649 = vadd.f32 %v645, 1.0
    %v650 = vadd.f32 %v646, 1.0
    %v651 = vadd.f32 %v647, 1.0
    %v652 = vmul.f32 %v648, 3.5
    %v653 = vmul.f32 %v649, 3.5
    %v654 = vmul.f32 %v650, 3.5
    %v655 = vmul.f32 %v651, 3.5
    %v656 = vadd.f32 %v652, -5.0
    %v657 = vadd.f32 %v653, -5.0
    %v658 = vadd.f32 %v654, -5.0
    %v659 = vadd.f32 %v655, -5.0
    %v660 = vlaneseq
    %v661 = vand.u32 %v660, 127
    %vm662 = vcmp.lt.s32.totalorder %v661, 6
    %v663 = vsel %vm662, %v630, %v656
    %v664 = vsel %vm662, %v633, %v657
    %v665 = vsel %vm662, %v638, %v658
    %v666 = vsel %vm662, %v641, %v659
    %667 = vst [vmem:[%s6] sm:$0xff] %v663
    %668 = vst [vmem:[%s6 + $0x8] sm:$0xff] %v664
    %669 = vst [vmem:[%s6 + $0x10] sm:$0xff] %v665
    %670 = vst [vmem:[%s6 + $0x18] sm:$0xff] %v666
    // Predicated region
    $region34: #{actor_forward.1} parent=1 // pred_check
      _
    $region35: #{actor_forward.1} parent=1 // pred_check_branch
      %672 = sbr.rel (0) target = $region37
    $region36: #{actor_forward.1} parent=1 // pred_region
      _
    $region37: #{actor_forward.1} parent=1 // pred_fallthru
      _
    // Predicated region
    $region38: #{actor_forward.1} parent=1 // pred_check
      _
    $region39: #{actor_forward.1} parent=1 // pred_check_branch
      %674 = sbr.rel (0) target = $region41
    $region40: #{actor_forward.1} parent=1 // pred_region
      _
    $region41: #{actor_forward.1} parent=1 // pred_fallthru
      _
    %675 = vsyncpa [#allocation3], 1
    %676 = vsyncpa [#allocation5], 1

</llo_original>
